<compile_context>
chip_gen: v5e
topology: v5e:2x2
jax: 0.10.0
libtpu: 0.0.40
codegen_flags: <defaults>
</compile_context>

<pallas_src>
import functools

import jax
import jax.numpy as jnp
from jax import lax
from jax.experimental import pallas as pl
from jax.experimental.pallas import tpu as pltpu


def _round_up(x, m):
    return (x + m - 1) // m * m


def _conv_stats_kernel(qf_ref, w_ref, mask_ref, conv_ref, sum_ref, ssd_ref,
                       p_ref, *, C, Ho, Wo):
    """One batch per grid step: stride-2 3x3 conv as a single im2col matmul,
    plus numerically-robust per-tile BatchNorm partial statistics."""
    Ws = Wo + 1               # flat column stride of one output row
    Lout = Ho * Ws            # flat (row-stride-padded) output columns
    Lpad = p_ref.shape[1]     # lane-dense padded columns (multiple of 128)
    M = Ho * Wo               # number of valid output pixels in this tile

    # Zero the lane-padding columns of the patch matrix so the (masked-out)
    # matmul results there are deterministic finite values.
    if Lpad > Lout:
        p_ref[:, Lout:] = jnp.zeros((9 * C, Lpad - Lout), p_ref.dtype)

    # In-kernel "im2col": every tap of the stride-2 3x3 conv is a contiguous
    # flat-shifted slice of one of the four 2x2-parity planes, so no strided
    # HBM access, no gathers and no in-kernel reshape are needed.
    for kh in range(3):
        dr, rp = kh // 2, kh % 2
        for kw in range(3):
            dc, cp = kw // 2, kw % 2
            plane = rp * 2 + cp
            off = dr * Ws + dc
            t = kh * 3 + kw
            p_ref[t * C:(t + 1) * C, :Lout] = (
                qf_ref[0, plane * C:(plane + 1) * C, off:off + Lout])

    # Single im2col matmul on the MXU with f32 accumulation.
    acc = jnp.dot(w_ref[...], p_ref[...], preferred_element_type=jnp.float32)
    conv_ref[0] = acc.astype(conv_ref.dtype)

    # Per-tile BN statistics from the f32 accumulator (shifted / Chan form):
    # per-channel sum over valid columns and sum of squared deviations about
    # the tile's own mean.  `mask` drops the stride column and lane padding.
    mask = mask_ref[...]                               # (1, Lpad) of {0., 1.}
    s = jnp.sum(acc * mask, axis=1, keepdims=True)     # (C, 1)
    m_t = s * (1.0 / M)
    d = (acc - m_t) * mask
    sum_ref[0] = s
    ssd_ref[0] = jnp.sum(d * d, axis=1, keepdims=True)


def _bn_lrelu_kernel(conv_ref, scale_ref, shift_ref, o_ref, *, slope):
    """Normalize with precomputed per-channel scale/shift, then LeakyReLU."""
    y = conv_ref[0].astype(jnp.float32) * scale_ref[...] + shift_ref[...]
    o_ref[0] = jnp.where(y > 0, y, slope * y)


def downsample(x_nchw, weight_oihw, gamma, beta, *, eps=1e-5,
               negative_slope=0.01, compute_dtype=jnp.bfloat16):
    """Forward pass of DownSample. x_nchw: (N, C, H, W) f32 -> (N, C, Ho, Wo) f32.

    `compute_dtype` is the MXU operand dtype and the storage dtype of the conv
    intermediate (bf16 by default).  Accumulation, BN statistics and the final
    activations are always f32.  Note: in the bf16 path the batch statistics
    are derived from a conv of bf16-rounded inputs, so they differ from an f32
    PyTorch reference at the bf16-rounding level.
    """
    N, C, H, W = x_nchw.shape
    Ho = (H - 1) // 2 + 1
    Wo = (W - 1) // 2 + 1
    M = Ho * Wo
    Hq, Wq = Ho + 1, Wo + 1                 # parity-plane extents
    Ws = Wq                                 # flat stride of one output row
    Lout = Ho * Ws                          # flat conv columns (stride-padded)
    Lpad = _round_up(Lout, 128)             # lane-dense conv / output columns
    Lq = _round_up(Hq * Wq + 1, 128)        # lane-dense parity-plane columns
                                            # (+1 headroom for the (+1,+1) tap)

    x = x_nchw.astype(jnp.float32)
    # Reflect padding (PyTorch padding_mode='reflect', padding=1).
    xpad = jnp.pad(x, ((0, 0), (0, 0), (1, 1), (1, 1)), mode="reflect")
    # Pad to even extents so all four parity planes share one shape
    # (no-op for even H, W; the padded values are never used by valid taps).
    xpad = jnp.pad(xpad, ((0, 0), (0, 0),
                          (0, 2 * Hq - (H + 2)), (0, 2 * Wq - (W + 2))))
    xpad = xpad.astype(compute_dtype)

    # 2x2 parity deinterleave (~1x input traffic) done once in XLA; the 9 taps
    # are rebuilt in-kernel, so the 9C-wide patch matrix never touches HBM.
    # TODO(synk): the reflect pad + deinterleave could also move in-kernel via
    # memory_space=pl.ANY + manual DMA for another ~1x traffic saving.
    planes = jnp.stack(
        [xpad[:, :, rp::2, cp::2] for rp in (0, 1) for cp in (0, 1)], axis=1)
    qf = planes.reshape(N, 4 * C, Hq * Wq)
    qf = jnp.pad(qf, ((0, 0), (0, 0), (0, Lq - Hq * Wq)))

    # Weight (Cout, Cin, 3, 3) -> (Cout, 9*Cin); column order (kh, kw, cin)
    # matches the patch-row order built in the kernel.
    wt = (jnp.transpose(weight_oihw, (0, 2, 3, 1))
          .reshape(C, 9 * C).astype(compute_dtype))

    # Valid-column mask: drops the per-row stride column and the lane padding.
    q = jnp.arange(Lpad)
    colmask = (((q % Ws) < Wo) & (q < Lout)).astype(jnp.float32).reshape(1, Lpad)

    # Per-generation VMEM budget (v7x: 64 MiB, v5e/v6e: 128 MiB physical).
    vmem_cap = 64 * 1024 * 1024
    try:
        cap = getattr(pltpu.get_tpu_info(), "vmem_capacity_bytes", None)
        if isinstance(cap, int) and cap > 0:
            vmem_cap = cap
    except Exception:
        pass
    vmem_limit = max(32 * 1024 * 1024, min(vmem_cap // 2, 100 * 1024 * 1024))

    cparams = pltpu.CompilerParams(
        dimension_semantics=("parallel",),   # batch steps split over v7x's 2 TCs
        vmem_limit_bytes=vmem_limit,
    )

    # Pass 1: conv (one im2col matmul per batch) + robust partial BN stats.
    # TODO(synk): for very large images, tile this pass over output-row bands
    # (overlapping parity-plane rows) instead of one whole image per grid step.
    conv, psum, pssd = pl.pallas_call(
        functools.partial(_conv_stats_kernel, C=C, Ho=Ho, Wo=Wo),
        grid=(N,),
        in_specs=[
            pl.BlockSpec((1, 4 * C, Lq), lambda n: (n, 0, 0)),
            pl.BlockSpec((C, 9 * C), lambda n: (0, 0)),
            pl.BlockSpec((1, Lpad), lambda n: (0, 0)),
        ],
        out_specs=[
            pl.BlockSpec((1, C, Lpad), lambda n: (n, 0, 0)),
            pl.BlockSpec((1, C, 1), lambda n: (n, 0, 0)),
            pl.BlockSpec((1, C, 1), lambda n: (n, 0, 0)),
        ],
        out_shape=[
            jax.ShapeDtypeStruct((N, C, Lpad), compute_dtype),   # conv (bf16 by default)
            jax.ShapeDtypeStruct((N, C, 1), jnp.float32),        # per-tile sum
            jax.ShapeDtypeStruct((N, C, 1), jnp.float32),        # per-tile ssd
        ],
        scratch_shapes=[pltpu.VMEM((9 * C, Lpad), compute_dtype)],
        compiler_params=cparams,
    )(qf, wt, colmask)

    # Tiny cross-tile combination (Chan's parallel variance), plain JAX.
    cnt = jnp.float32(N * M)
    sum_n = psum[..., 0]                                   # (N, C)
    ssd_n = pssd[..., 0]                                   # (N, C)
    mean = jnp.sum(sum_n, axis=0) / cnt                    # (C,)
    m_n = sum_n / jnp.float32(M)                           # per-tile means
    total_ssd = (jnp.sum(ssd_n, axis=0)
                 + jnp.float32(M) * jnp.sum((m_n - mean) ** 2, axis=0))
    var = total_ssd / cnt                                  # biased variance (BN)
    scale = gamma.astype(jnp.float32) * lax.rsqrt(var + eps)
    shift = beta.astype(jnp.float32) - mean * scale

    # Pass 2: normalize + affine + LeakyReLU on lane-dense channel-first tiles.
    # (input_output_aliases is not applicable: conv is bf16, output is f32.)
    out = pl.pallas_call(
        functools.partial(_bn_lrelu_kernel, slope=negative_slope),
        grid=(N,),
        in_specs=[
            pl.BlockSpec((1, C, Lpad), lambda n: (n, 0, 0)),
            pl.BlockSpec((C, 1), lambda n: (0, 0)),
            pl.BlockSpec((C, 1), lambda n: (0, 0)),
        ],
        out_specs=pl.BlockSpec((1, C, Lpad), lambda n: (n, 0, 0)),
        out_shape=jax.ShapeDtypeStruct((N, C, Lpad), jnp.float32),
        compiler_params=cparams,
    )(conv, scale.reshape(C, 1), shift.reshape(C, 1))

    # Drop the per-row stride column and the lane padding, back to NCHW.
    return out[:, :, :Lout].reshape(N, C, Ho, Ws)[:, :, :, :Wo]


def _reference(x_nchw, weight_oihw, gamma, beta):
    """Pure-JAX f32 reference for correctness checking."""
    xpad = jnp.pad(x_nchw, ((0, 0), (0, 0), (1, 1), (1, 1)), mode="reflect")
    conv = lax.conv_general_dilated(
        xpad, weight_oihw, window_strides=(2, 2), padding="VALID",
        dimension_numbers=("NCHW", "OIHW", "NCHW"),
        precision=lax.Precision.HIGHEST,
    )
    mean = jnp.mean(conv, axis=(0, 2, 3), keepdims=True)
    var = jnp.mean((conv - mean) ** 2, axis=(0, 2, 3), keepdims=True)
    y = (conv - mean) * lax.rsqrt(var + 1e-5)
    y = y * gamma.reshape(1, -1, 1, 1) + beta.reshape(1, -1, 1, 1)
    return jnp.where(y > 0, y, 0.01 * y)


if __name__ == "__main__":
    N, C, H, W = 2, 4, 16, 16
    key = jax.random.PRNGKey(0)
    kx, kw = jax.random.split(key)

    x = jax.random.normal(kx, (N, C, H, W), dtype=jnp.float32)
    # Conv2d(channel, channel, 3) weight, deterministic init (no checkpoint).
    weight = jax.random.normal(kw, (C, C, 3, 3), dtype=jnp.float32) * 0.1
    # BatchNorm2d default affine init.
    gamma = jnp.ones((C,), jnp.float32)
    beta = jnp.zeros((C,), jnp.float32)

    ref = _reference(x, weight, gamma, beta)

    # Default path: bf16 operands + bf16 conv intermediate (loose bf16 check).
    out = jax.block_until_ready(downsample(x, weight, gamma, beta))
    assert out.shape == (N, C, H // 2, W // 2)
    err = float(jnp.max(jnp.abs(out - ref)))
    assert jnp.allclose(out, ref, atol=1e-1, rtol=1e-1), err

    # Full-f32 path (operands + conv intermediate in f32) — strict check.
    out_f32 = jax.block_until_ready(
        downsample(x, weight, gamma, beta, compute_dtype=jnp.float32))
    err_f32 = float(jnp.max(jnp.abs(out_f32 - ref)))
    assert jnp.allclose(out_f32, ref, atol=1e-3, rtol=1e-3), err_f32

    print("KERNEL_OK")
</pallas_src>

<mosaic_0001>
module attributes {stable_mosaic.version = 11 : i64} {
  func.func @_conv_stats_kernel(%arg0: i32, %arg1: memref<1x16x128xbf16, #tpu.memory_space<vmem>>, %arg2: memref<4x36xbf16, #tpu.memory_space<vmem>>, %arg3: memref<1x128xf32, #tpu.memory_space<vmem>>, %arg4: memref<1x4x128xbf16, #tpu.memory_space<vmem>>, %arg5: memref<1x4x1xf32, #tpu.memory_space<vmem>>, %arg6: memref<1x4x1xf32, #tpu.memory_space<vmem>>, %arg7: memref<36x128xbf16, #tpu.memory_space<vmem>>) attributes {dimension_semantics = [#tpu.dimension_semantics<parallel>], iteration_bounds = array<i64: 2>, scalar_prefetch = 0 : i64, scratch_operands = 1 : i64, tpu.core_type = #tpu.core_type<tc>, window_params = [{transform_indices = @transform_0, window_bounds = array<i64: 1, 16, 128>}, {pipeline_mode = #tpu.pipeline_mode<synchronous>, transform_indices = @transform_1, window_bounds = array<i64: 4, 36>}, {pipeline_mode = #tpu.pipeline_mode<synchronous>, transform_indices = @transform_2, window_bounds = array<i64: 1, 128>}, {transform_indices = @transform_3, window_bounds = array<i64: 1, 4, 128>}, {transform_indices = @transform_4, window_bounds = array<i64: 1, 4, 1>}, {transform_indices = @transform_5, window_bounds = array<i64: 1, 4, 1>}]} {
    %cst = arith.constant 0.000000e+00 : bf16
    %0 = vector.broadcast %cst : bf16 to vector<36x56xbf16>
    %c0 = arith.constant 0 : index
    %c72 = arith.constant 72 : index
    %1 = vector.load %arg7[%c0, %c72] : memref<36x128xbf16, #tpu.memory_space<vmem>>, vector<36x56xbf16>
    tpu.vector_store %arg7[%c0, %c72], %0 {strides = array<i32>} : memref<36x128xbf16, #tpu.memory_space<vmem>>, vector<36x56xbf16>,
    %c0_0 = arith.constant 0 : index
    %c0_1 = arith.constant 0 : index
    %c0_2 = arith.constant 0 : index
    %2 = vector.load %arg1[%c0_0, %c0_1, %c0_2] : memref<1x16x128xbf16, #tpu.memory_space<vmem>>, vector<1x4x72xbf16>
    %3 = vector.shape_cast %2 : vector<1x4x72xbf16> to vector<4x72xbf16>
    %c0_3 = arith.constant 0 : index
    %c0_4 = arith.constant 0 : index
    %4 = vector.load %arg7[%c0_3, %c0_4] : memref<36x128xbf16, #tpu.memory_space<vmem>>, vector<4x72xbf16>
    tpu.vector_store %arg7[%c0_3, %c0_4], %3 {strides = array<i32>} : memref<36x128xbf16, #tpu.memory_space<vmem>>, vector<4x72xbf16>,
    %c0_5 = arith.constant 0 : index
    %c4 = arith.constant 4 : index
    %c0_6 = arith.constant 0 : index
    %5 = vector.load %arg1[%c0_5, %c4, %c0_6] : memref<1x16x128xbf16, #tpu.memory_space<vmem>>, vector<1x4x72xbf16>
    %6 = vector.shape_cast %5 : vector<1x4x72xbf16> to vector<4x72xbf16>
    %c4_7 = arith.constant 4 : index
    %c0_8 = arith.constant 0 : index
    %7 = vector.load %arg7[%c4_7, %c0_8] : memref<36x128xbf16, #tpu.memory_space<vmem>>, vector<4x72xbf16>
    tpu.vector_store %arg7[%c4_7, %c0_8], %6 {strides = array<i32>} : memref<36x128xbf16, #tpu.memory_space<vmem>>, vector<4x72xbf16>,
    %c0_9 = arith.constant 0 : index
    %c0_10 = arith.constant 0 : index
    %c1 = arith.constant 1 : index
    %8 = vector.load %arg1[%c0_9, %c0_10, %c1] : memref<1x16x128xbf16, #tpu.memory_space<vmem>>, vector<1x4x72xbf16>
    %9 = vector.shape_cast %8 : vector<1x4x72xbf16> to vector<4x72xbf16>
    %c8 = arith.constant 8 : index
    %c0_11 = arith.constant 0 : index
    %10 = vector.load %arg7[%c8, %c0_11] : memref<36x128xbf16, #tpu.memory_space<vmem>>, vector<4x72xbf16>
    tpu.vector_store %arg7[%c8, %c0_11], %9 {strides = array<i32>} : memref<36x128xbf16, #tpu.memory_space<vmem>>, vector<4x72xbf16>,
    %c0_12 = arith.constant 0 : index
    %c8_13 = arith.constant 8 : index
    %c0_14 = arith.constant 0 : index
    %11 = vector.load %arg1[%c0_12, %c8_13, %c0_14] : memref<1x16x128xbf16, #tpu.memory_space<vmem>>, vector<1x4x72xbf16>
    %12 = vector.shape_cast %11 : vector<1x4x72xbf16> to vector<4x72xbf16>
    %c12 = arith.constant 12 : index
    %c0_15 = arith.constant 0 : index
    %13 = vector.load %arg7[%c12, %c0_15] : memref<36x128xbf16, #tpu.memory_space<vmem>>, vector<4x72xbf16>
    tpu.vector_store %arg7[%c12, %c0_15], %12 {strides = array<i32>} : memref<36x128xbf16, #tpu.memory_space<vmem>>, vector<4x72xbf16>,
    %c0_16 = arith.constant 0 : index
    %c12_17 = arith.constant 12 : index
    %c0_18 = arith.constant 0 : index
    %14 = vector.load %arg1[%c0_16, %c12_17, %c0_18] : memref<1x16x128xbf16, #tpu.memory_space<vmem>>, vector<1x4x72xbf16>
    %15 = vector.shape_cast %14 : vector<1x4x72xbf16> to vector<4x72xbf16>
    %c16 = arith.constant 16 : index
    %c0_19 = arith.constant 0 : index
    %16 = vector.load %arg7[%c16, %c0_19] : memref<36x128xbf16, #tpu.memory_space<vmem>>, vector<4x72xbf16>
    tpu.vector_store %arg7[%c16, %c0_19], %15 {strides = array<i32>} : memref<36x128xbf16, #tpu.memory_space<vmem>>, vector<4x72xbf16>,
    %c0_20 = arith.constant 0 : index
    %c8_21 = arith.constant 8 : index
    %c1_22 = arith.constant 1 : index
    %17 = vector.load %arg1[%c0_20, %c8_21, %c1_22] : memref<1x16x128xbf16, #tpu.memory_space<vmem>>, vector<1x4x72xbf16>
    %18 = vector.shape_cast %17 : vector<1x4x72xbf16> to vector<4x72xbf16>
    %c20 = arith.constant 20 : index
    %c0_23 = arith.constant 0 : index
    %19 = vector.load %arg7[%c20, %c0_23] : memref<36x128xbf16, #tpu.memory_space<vmem>>, vector<4x72xbf16>
    tpu.vector_store %arg7[%c20, %c0_23], %18 {strides = array<i32>} : memref<36x128xbf16, #tpu.memory_space<vmem>>, vector<4x72xbf16>,
    %c0_24 = arith.constant 0 : index
    %c0_25 = arith.constant 0 : index
    %c9 = arith.constant 9 : index
    %20 = vector.load %arg1[%c0_24, %c0_25, %c9] : memref<1x16x128xbf16, #tpu.memory_space<vmem>>, vector<1x4x72xbf16>
    %21 = vector.shape_cast %20 : vector<1x4x72xbf16> to vector<4x72xbf16>
    %c24 = arith.constant 24 : index
    %c0_26 = arith.constant 0 : index
    %22 = vector.load %arg7[%c24, %c0_26] : memref<36x128xbf16, #tpu.memory_space<vmem>>, vector<4x72xbf16>
    tpu.vector_store %arg7[%c24, %c0_26], %21 {strides = array<i32>} : memref<36x128xbf16, #tpu.memory_space<vmem>>, vector<4x72xbf16>,
    %c0_27 = arith.constant 0 : index
    %c4_28 = arith.constant 4 : index
    %c9_29 = arith.constant 9 : index
    %23 = vector.load %arg1[%c0_27, %c4_28, %c9_29] : memref<1x16x128xbf16, #tpu.memory_space<vmem>>, vector<1x4x72xbf16>
    %24 = vector.shape_cast %23 : vector<1x4x72xbf16> to vector<4x72xbf16>
    %c28 = arith.constant 28 : index
    %c0_30 = arith.constant 0 : index
    %25 = vector.load %arg7[%c28, %c0_30] : memref<36x128xbf16, #tpu.memory_space<vmem>>, vector<4x72xbf16>
    tpu.vector_store %arg7[%c28, %c0_30], %24 {strides = array<i32>} : memref<36x128xbf16, #tpu.memory_space<vmem>>, vector<4x72xbf16>,
    %c0_31 = arith.constant 0 : index
    %c0_32 = arith.constant 0 : index
    %c10 = arith.constant 10 : index
    %26 = vector.load %arg1[%c0_31, %c0_32, %c10] : memref<1x16x128xbf16, #tpu.memory_space<vmem>>, vector<1x4x72xbf16>
    %27 = vector.shape_cast %26 : vector<1x4x72xbf16> to vector<4x72xbf16>
    %c32 = arith.constant 32 : index
    %c0_33 = arith.constant 0 : index
    %28 = vector.load %arg7[%c32, %c0_33] : memref<36x128xbf16, #tpu.memory_space<vmem>>, vector<4x72xbf16>
    tpu.vector_store %arg7[%c32, %c0_33], %27 {strides = array<i32>} : memref<36x128xbf16, #tpu.memory_space<vmem>>, vector<4x72xbf16>,
    %c0_34 = arith.constant 0 : index
    %c0_35 = arith.constant 0 : index
    %29 = vector.load %arg2[%c0_34, %c0_35] : memref<4x36xbf16, #tpu.memory_space<vmem>>, vector<4x36xbf16>
    %c0_36 = arith.constant 0 : index
    %c0_37 = arith.constant 0 : index
    %30 = vector.load %arg7[%c0_36, %c0_37] : memref<36x128xbf16, #tpu.memory_space<vmem>>, vector<36x128xbf16>
    %cst_38 = arith.constant dense<0.000000e+00> : vector<4x128xf32>
    %31 = tpu.matmul %29, %30, %cst_38 {dimension_numbers = #tpu.dot_dimension_numbers<[1], [0], [0], [1], [0, 0, 1, 1], [], []>} : vector<4x36xbf16>, vector<36x128xbf16>, vector<4x128xf32> -> vector<4x128xf32>
    %32 = arith.truncf %31 : vector<4x128xf32> to vector<4x128xbf16>
    %c0_39 = arith.constant 0 : index
    %c0_40 = arith.constant 0 : index
    %c0_41 = arith.constant 0 : index
    %33 = vector.load %arg4[%c0_39, %c0_40, %c0_41] : memref<1x4x128xbf16, #tpu.memory_space<vmem>>, vector<1x4x128xbf16>
    %34 = vector.shape_cast %33 : vector<1x4x128xbf16> to vector<4x128xbf16>
    %35 = vector.shape_cast %32 : vector<4x128xbf16> to vector<1x4x128xbf16>
    tpu.vector_store %arg4[%c0_39, %c0_40, %c0_41], %35 {strides = array<i32>} : memref<1x4x128xbf16, #tpu.memory_space<vmem>>, vector<1x4x128xbf16>,
    %c0_42 = arith.constant 0 : index
    %c0_43 = arith.constant 0 : index
    %36 = vector.load %arg3[%c0_42, %c0_43] : memref<1x128xf32, #tpu.memory_space<vmem>>, vector<1x128xf32>
    %37 = vector.broadcast %36 : vector<1x128xf32> to vector<4x128xf32>
    %38 = arith.mulf %31, %37 : vector<4x128xf32>
    %cst_44 = arith.constant dense<0.000000e+00> : vector<4xf32>
    %39 = vector.multi_reduction <add>, %38, %cst_44 [1] : vector<4x128xf32> to vector<4xf32>
    %40 = vector.shape_cast %39 : vector<4xf32> to vector<4x1xf32>
    %cst_45 = arith.constant 1.562500e-02 : f32
    %41 = vector.broadcast %cst_45 : f32 to vector<4x1xf32>
    %42 = arith.mulf %40, %41 : vector<4x1xf32>
    %43 = vector.broadcast %42 : vector<4x1xf32> to vector<4x128xf32>
    %44 = arith.subf %31, %43 : vector<4x128xf32>
    %45 = vector.broadcast %36 : vector<1x128xf32> to vector<4x128xf32>
    %46 = arith.mulf %44, %45 : vector<4x128xf32>
    %c0_46 = arith.constant 0 : index
    %c0_47 = arith.constant 0 : index
    %c0_48 = arith.constant 0 : index
    %47 = vector.load %arg5[%c0_46, %c0_47, %c0_48] : memref<1x4x1xf32, #tpu.memory_space<vmem>>, vector<1x4x1xf32>
    %48 = vector.shape_cast %47 : vector<1x4x1xf32> to vector<4x1xf32>
    %49 = vector.shape_cast %40 : vector<4x1xf32> to vector<1x4x1xf32>
    tpu.vector_store %arg5[%c0_46, %c0_47, %c0_48], %49 {strides = array<i32>} : memref<1x4x1xf32, #tpu.memory_space<vmem>>, vector<1x4x1xf32>,
    %50 = arith.mulf %46, %46 : vector<4x128xf32>
    %cst_49 = arith.constant dense<0.000000e+00> : vector<4xf32>
    %51 = vector.multi_reduction <add>, %50, %cst_49 [1] : vector<4x128xf32> to vector<4xf32>
    %52 = vector.shape_cast %51 : vector<4xf32> to vector<4x1xf32>
    %c0_50 = arith.constant 0 : index
    %c0_51 = arith.constant 0 : index
    %c0_52 = arith.constant 0 : index
    %53 = vector.load %arg6[%c0_50, %c0_51, %c0_52] : memref<1x4x1xf32, #tpu.memory_space<vmem>>, vector<1x4x1xf32>
    %54 = vector.shape_cast %53 : vector<1x4x1xf32> to vector<4x1xf32>
    %55 = vector.shape_cast %52 : vector<4x1xf32> to vector<1x4x1xf32>
    tpu.vector_store %arg6[%c0_50, %c0_51, %c0_52], %55 {strides = array<i32>} : memref<1x4x1xf32, #tpu.memory_space<vmem>>, vector<1x4x1xf32>,
    return
  }
  func.func @transform_0(%arg0: i32) -> (i32, i32, i32) {
    %c0_i32 = arith.constant 0 : i32
    %c0_i32_0 = arith.constant 0 : i32
    %c0_i32_1 = arith.constant 0 : i32
    return %arg0, %c0_i32, %c0_i32_0 : i32, i32, i32
  }
  func.func @transform_1(%arg0: i32) -> (i32, i32) {
    %c0_i32 = arith.constant 0 : i32
    %c0_i32_0 = arith.constant 0 : i32
    %c0_i32_1 = arith.constant 0 : i32
    return %c0_i32, %c0_i32_0 : i32, i32
  }
  func.func @transform_2(%arg0: i32) -> (i32, i32) {
    %c0_i32 = arith.constant 0 : i32
    %c0_i32_0 = arith.constant 0 : i32
    %c0_i32_1 = arith.constant 0 : i32
    return %c0_i32, %c0_i32_0 : i32, i32
  }
  func.func @transform_3(%arg0: i32) -> (i32, i32, i32) {
    %c0_i32 = arith.constant 0 : i32
    %c0_i32_0 = arith.constant 0 : i32
    %c0_i32_1 = arith.constant 0 : i32
    return %arg0, %c0_i32, %c0_i32_0 : i32, i32, i32
  }
  func.func @transform_4(%arg0: i32) -> (i32, i32, i32) {
    %c0_i32 = arith.constant 0 : i32
    %c0_i32_0 = arith.constant 0 : i32
    %c0_i32_1 = arith.constant 0 : i32
    return %arg0, %c0_i32, %c0_i32_0 : i32, i32, i32
  }
  func.func @transform_5(%arg0: i32) -> (i32, i32, i32) {
    %c0_i32 = arith.constant 0 : i32
    %c0_i32_0 = arith.constant 0 : i32
    %c0_i32_1 = arith.constant 0 : i32
    return %arg0, %c0_i32, %c0_i32_0 : i32, i32, i32
  }
}

</mosaic_0001>

<llo_original>
// kernel: tpu_custom_call.1
$region0: #{tpu_custom_call.1}
  #allocation0 [shape = 'u32[]', space=smem, size = 0x4, offset = 0x4, fixed_abs, tag = 'smem constant byte address 0x4 - core index']
  #allocation1 [shape = 'u32[72,128]{1,0:T(1,128)}', space=vmem, size = 0x9000, scoped, tag = 'internal scratch']
  #allocation2 [shape = 'bf16[36,128]{1,0:T(8,128)(2,1)}', space=vmem, size = 0x2800, scoped, tag = 'scratch operand']
  %s0 = inlined_call_operand.hbm [shape: bf16[2,16,128], index: 0, kind: input, shape index: {}]
  %s1 = inlined_call_operand.hbm [shape: bf16[4,36], index: 1, kind: input, shape index: {}]
  %s2 = inlined_call_operand.vmem [shape: f32[1,128], index: 2, kind: input, shape index: {}]
  %s3 = inlined_call_operand.hbm [shape: bf16[2,4,128], index: 3, kind: output, shape index: {0}]
  %s4 = inlined_call_operand.vmem [shape: f32[2,4,1], index: 4, kind: output, shape index: {1}]
  %s5 = inlined_call_operand.vmem [shape: f32[2,4,1], index: 5, kind: output, shape index: {2}]
  %6 = xla_tuple %s3, %s4, %s5
  %s7 = sld [smem:[#allocation0]]
  $region69: #{tpu_custom_call.1} parent=0
    _
  %s9 = ssub.s32 1, %s7
  %s10 = scalar_select 0, %s9, %s7
  $region1: #{tpu_custom_call.1} parent=0
    #allocation3 [shape = 'u8[8192]{0}', space=vmem, size = 0x2000, scoped, tag = 'input window, operand 0']
    #allocation4 [shape = 's32[2]{0}', space=sflag, size = 0x8, scoped, tag = 'scoped memory for tpu_custom_call.1']
    #allocation5 [shape = 's32[2]{0}', space=sflag, size = 0x8, scoped, tag = 'scoped memory for tpu_custom_call.1']
    #allocation6 [shape = 'u8[1024]{0}', space=vmem, size = 0x400, scoped, tag = 'input window, operand 1, single buffered']
    #allocation7 [shape = 's32[1]{0}', space=sflag, size = 0x4, scoped, tag = 'scoped memory for tpu_custom_call.1']
    #allocation8 [shape = 'u8[2048]{0}', space=vmem, size = 0x800, scoped, tag = 'output window, operand 0']
    %11 = vsyncpa [#allocation4], 0
    %s12 = scalar_lea.sflag [#allocation4], 1
    %13 = vsyncpa %s12, 0
    %14 = vsyncpa [#allocation7], 0
    %15 = vsyncpa [#allocation5], 0
    %s16 = scalar_lea.sflag [#allocation5], 1
    %17 = vsyncpa %s16, 0
    loop: start=0, step=1, limit=4
    $region2: #{tpu_custom_call.1} parent=1 // loop_pre_header
      _
    $region3: #{tpu_custom_call.1} parent=1 // loop_header
      %s19 = sphi 0, %s23
      %p20 = scmp.ge.s32.totalorder %s19, 4
      %s29 = sphi 0, %s31
      %s32 = sphi 0, %s29
      %s33 = sphi 0, %s32
      %s49 = sphi 0, %s33
      %s53 = sphi 0, %s53
      %s55 = sphi 0, %s53
      %s56 = sphi 0, %s55
      %s70 = sphi 0, %s56
      %s74 = sphi 0, %s74
      %s76 = sphi 0, %s74
      %s77 = sphi 0, %s76
      %s91 = sphi 0, %s77
      %s97 = sphi 0, %s99
      %s100 = sphi 0, %s97
      %s101 = sphi 0, %s100
      %s117 = sphi 0, %s101
      %s123 = sphi 0, %s125
      %s126 = sphi 0, %s123
      %s127 = sphi 0, %s126
      %s143 = sphi 0, %s127
      %s149 = sphi 0, %s151
      %s152 = sphi 0, %s149
      %s153 = sphi 0, %s152
      %s169 = sphi 0, %s153
    $region4: #{tpu_custom_call.1} parent=1 // loop_header_branch
      %22 = sbr.rel (%p20) target = $region8
    $region5: #{tpu_custom_call.1} parent=1 // loop_body
      %s24 = ssub.s32 %s19, 1
      %s25 = ssub.s32 %s19, 2
      %s26 = sadd.s32 %s19, 1
      %s27 = ssub.s32 %s19, %s26
      %p28 = scmp.eq.s32.totalorder %s27, 0
      %s30 = sadd.s32 %s29, 1
      %s31 = scalar_select %p28, %s29, %s30
      %p34 = pneg %p28
      %p35 = scmp.eq.s32.totalorder %s19, 1
      %p36 = por %p34, %p35
      %p37 = scmp.ne.s32.totalorder %s29, %s32
      %p38 = scmp.eq.s32.totalorder %s19, 0
      %p39 = por %p37, %p38
      %p40 = scmp.ne.s32.totalorder %s29, %s32
      %p41 = scmp.eq.s32.totalorder %s24, 1
      %p42 = por %p40, %p41
      %p43 = scmp.ne.s32.totalorder %s32, %s33
      %p44 = scmp.eq.s32.totalorder %s24, 0
      %p45 = por %p43, %p44
      %p46 = scmp.ne.s32.totalorder %s32, %s33
      %p47 = scmp.eq.s32.totalorder %s25, 1
      %p48 = por %p46, %p47
      %p50 = scmp.ne.s32.totalorder %s33, %s49
      %p51 = scmp.eq.s32.totalorder %s25, 0
      %p52 = por %p50, %p51
      %s54 = sadd.s32 %s53, 1
      %p57 = scmp.eq.s32.totalorder %s19, 1
      %p58 = scmp.ne.s32.totalorder %s53, %s55
      %p59 = scmp.eq.s32.totalorder %s19, 0
      %p60 = por %p58, %p59
      %p61 = scmp.ne.s32.totalorder %s53, %s55
      %p62 = scmp.eq.s32.totalorder %s24, 1
      %p63 = por %p61, %p62
      %p64 = scmp.ne.s32.totalorder %s55, %s56
      %p65 = scmp.eq.s32.totalorder %s24, 0
      %p66 = por %p64, %p65
      %p67 = scmp.ne.s32.totalorder %s55, %s56
      %p68 = scmp.eq.s32.totalorder %s25, 1
      %p69 = por %p67, %p68
      %p71 = scmp.ne.s32.totalorder %s56, %s70
      %p72 = scmp.eq.s32.totalorder %s25, 0
      %p73 = por %p71, %p72
      %s75 = sadd.s32 %s74, 1
      %p78 = scmp.eq.s32.totalorder %s19, 1
      %p79 = scmp.ne.s32.totalorder %s74, %s76
      %p80 = scmp.eq.s32.totalorder %s19, 0
      %p81 = por %p79, %p80
      %p82 = scmp.ne.s32.totalorder %s74, %s76
      %p83 = scmp.eq.s32.totalorder %s24, 1
      %p84 = por %p82, %p83
      %p85 = scmp.ne.s32.totalorder %s76, %s77
      %p86 = scmp.eq.s32.totalorder %s24, 0
      %p87 = por %p85, %p86
      %p88 = scmp.ne.s32.totalorder %s76, %s77
      %p89 = scmp.eq.s32.totalorder %s25, 1
      %p90 = por %p88, %p89
      %p92 = scmp.ne.s32.totalorder %s77, %s91
      %p93 = scmp.eq.s32.totalorder %s25, 0
      %p94 = por %p92, %p93
      %s95 = ssub.s32 %s19, %s26
      %p96 = scmp.eq.s32.totalorder %s95, 0
      %s98 = sadd.s32 %s97, 1
      %s99 = scalar_select %p96, %s97, %s98
      %p102 = pneg %p96
      %p103 = scmp.eq.s32.totalorder %s19, 1
      %p104 = por %p102, %p103
      %p105 = scmp.ne.s32.totalorder %s97, %s100
      %p106 = scmp.eq.s32.totalorder %s19, 0
      %p107 = por %p105, %p106
      %p108 = scmp.ne.s32.totalorder %s97, %s100
      %p109 = scmp.eq.s32.totalorder %s24, 1
      %p110 = por %p108, %p109
      %p111 = scmp.ne.s32.totalorder %s100, %s101
      %p112 = scmp.eq.s32.totalorder %s24, 0
      %p113 = por %p111, %p112
      %p114 = scmp.ne.s32.totalorder %s100, %s101
      %p115 = scmp.eq.s32.totalorder %s25, 1
      %p116 = por %p114, %p115
      %p118 = scmp.ne.s32.totalorder %s101, %s117
      %p119 = scmp.eq.s32.totalorder %s25, 0
      %p120 = por %p118, %p119
      %s121 = ssub.s32 %s19, %s26
      %p122 = scmp.eq.s32.totalorder %s121, 0
      %s124 = sadd.s32 %s123, 1
      %s125 = scalar_select %p122, %s123, %s124
      %p128 = pneg %p122
      %p129 = scmp.eq.s32.totalorder %s19, 1
      %p130 = por %p128, %p129
      %p131 = scmp.ne.s32.totalorder %s123, %s126
      %p132 = scmp.eq.s32.totalorder %s19, 0
      %p133 = por %p131, %p132
      %p134 = scmp.ne.s32.totalorder %s123, %s126
      %p135 = scmp.eq.s32.totalorder %s24, 1
      %p136 = por %p134, %p135
      %p137 = scmp.ne.s32.totalorder %s126, %s127
      %p138 = scmp.eq.s32.totalorder %s24, 0
      %p139 = por %p137, %p138
      %p140 = scmp.ne.s32.totalorder %s126, %s127
      %p141 = scmp.eq.s32.totalorder %s25, 1
      %p142 = por %p140, %p141
      %p144 = scmp.ne.s32.totalorder %s127, %s143
      %p145 = scmp.eq.s32.totalorder %s25, 0
      %p146 = por %p144, %p145
      %s147 = ssub.s32 %s19, %s26
      %p148 = scmp.eq.s32.totalorder %s147, 0
      %s150 = sadd.s32 %s149, 1
      %s151 = scalar_select %p148, %s149, %s150
      %p154 = pneg %p148
      %p155 = scmp.eq.s32.totalorder %s19, 1
      %p156 = por %p154, %p155
      %p157 = scmp.ne.s32.totalorder %s149, %s152
      %p158 = scmp.eq.s32.totalorder %s19, 0
      %p159 = por %p157, %p158
      %p160 = scmp.ne.s32.totalorder %s149, %s152
      %p161 = scmp.eq.s32.totalorder %s24, 1
      %p162 = por %p160, %p161
      %p163 = scmp.ne.s32.totalorder %s152, %s153
      %p164 = scmp.eq.s32.totalorder %s24, 0
      %p165 = por %p163, %p164
      %p166 = scmp.ne.s32.totalorder %s152, %s153
      %p167 = scmp.eq.s32.totalorder %s25, 1
      %p168 = por %p166, %p167
      %p170 = scmp.ne.s32.totalorder %s153, %s169
      %p171 = scmp.eq.s32.totalorder %s25, 0
      %p172 = por %p170, %p171
      %p173 = scmp.le.s32.totalorder 1, %s19
      %p174 = scmp.lt.s32.totalorder %s19, 3
      %p175 = pnand %p173, %p174
      %p176 = pneg %p175
      // Predicated region
      $region9: #{tpu_custom_call.1} parent=5 // pred_check
        _
      $region10: #{tpu_custom_call.1} parent=5 // pred_check_branch
        %178 = sbr.rel (%p175) target = $region12
      $region11: #{tpu_custom_call.1} parent=5 // pred_region
        %s179 = ssub.s32 %s19, 1
        // Predicated region
        $region13: #{tpu_custom_call.1} parent=11 // pred_check
          %p180 = pneg %p66
        $region14: #{tpu_custom_call.1} parent=11 // pred_check_branch
          %182 = sbr.rel (%p180) target = $region16
        $region15: #{tpu_custom_call.1} parent=11 // pred_region
          %184 = vsyncadd [#allocation7], 0
          %s186 = sshll.u32 %s1, 4
          %s187 = int_to_ptr.hbm [resolvable:$true] %s186
          %s188 = sshll.u32 [#allocation6], 4
          %s189 = int_to_ptr.vmem [resolvable:$true] %s188
          %191 = dma.hbm_to_vmem [thread:$0]  %s187, 32, %s189, [#allocation7]
        $region16: #{tpu_custom_call.1} parent=11 // pred_fallthru
          _
        // Predicated region
        $region17: #{tpu_custom_call.1} parent=11 // pred_check
          %p192 = pneg %p87
        $region18: #{tpu_custom_call.1} parent=11 // pred_check_branch
          %194 = sbr.rel (%p192) target = $region20
        $region19: #{tpu_custom_call.1} parent=11 // pred_region
          _
        $region20: #{tpu_custom_call.1} parent=11 // pred_fallthru
          _
      $region12: #{tpu_custom_call.1} parent=5 // pred_fallthru
        _
      %p195 = scmp.lt.s32.totalorder %s19, 2
      // Predicated region
      $region21: #{tpu_custom_call.1} parent=5 // pred_check
        %p196 = pneg %p195
      $region22: #{tpu_custom_call.1} parent=5 // pred_check_branch
        %198 = sbr.rel (%p196) target = $region24
      $region23: #{tpu_custom_call.1} parent=5 // pred_region
        // Predicated region
        $region25: #{tpu_custom_call.1} parent=23 // pred_check
          %p199 = pneg %p39
        $region26: #{tpu_custom_call.1} parent=23 // pred_check_branch
          %201 = sbr.rel (%p199) target = $region28
        $region27: #{tpu_custom_call.1} parent=23 // pred_region
          %s202 = sand.u32 %s29, 1
          %s203 = scalar_lea.sflag [#allocation4], %s202
          %s204 = sand.u32 %s29, 1
          %s205 = smul.addr %s204, 8
          %s206 = scalar_lea.vmem [#allocation3], %s205
          %208 = vsyncadd %s203, 0
          %s209 = smul.addr %s19, 2
          %s210 = smul.addr %s209, 4
          %s211 = scalar_lea.hbm %s0, %s210
          %s212 = sshll.u32 %s211, 4
          %s213 = int_to_ptr.hbm [resolvable:$true] %s212
          %s214 = sshll.u32 %s206, 4
          %s215 = int_to_ptr.vmem [resolvable:$true] %s214
          %220 = dma.hbm_to_vmem [thread:$0]  %s213, 128, %s215, %s203, 64, 64, 4
        $region28: #{tpu_custom_call.1} parent=23 // pred_fallthru
          _
      $region24: #{tpu_custom_call.1} parent=5 // pred_fallthru
        _
      %p221 = scmp.le.s32.totalorder 1, %s19
      %p222 = scmp.lt.s32.totalorder %s19, 3
      %p223 = pnand %p221, %p222
      %p224 = pneg %p223
      // Predicated region
      $region29: #{tpu_custom_call.1} parent=5 // pred_check
        _
      $region30: #{tpu_custom_call.1} parent=5 // pred_check_branch
        %226 = sbr.rel (%p223) target = $region32
      $region31: #{tpu_custom_call.1} parent=5 // pred_region
        %s227 = ssub.s32 %s19, 1
        %s228 = sand.u32 %s32, 1
        %s229 = scalar_lea.sflag [#allocation4], %s228
        %s230 = sand.u32 %s32, 1
        %s231 = smul.addr %s230, 8
        %s232 = scalar_lea.vmem [#allocation3], %s231
        // Predicated region
        $region33: #{tpu_custom_call.1} parent=31 // pred_check
          %p233 = pneg %p45
        $region34: #{tpu_custom_call.1} parent=31 // pred_check_branch
          %235 = sbr.rel (%p233) target = $region36
        $region35: #{tpu_custom_call.1} parent=31 // pred_region
          %237 = dma.done %s229, 128
        $region36: #{tpu_custom_call.1} parent=31 // pred_fallthru
          _
        // Predicated region
        $region37: #{tpu_custom_call.1} parent=31 // pred_check
          %p238 = pneg %p66
        $region38: #{tpu_custom_call.1} parent=31 // pred_check_branch
          %240 = sbr.rel (%p238) target = $region40
        $region39: #{tpu_custom_call.1} parent=31 // pred_region
          %242 = dma.done [#allocation7], 32
        $region40: #{tpu_custom_call.1} parent=31 // pred_fallthru
          _
        %s243 = sand.u32 %s32, 1
        %s244 = scalar_lea.sflag [#allocation4], %s243
        %s245 = sand.u32 %s32, 1
        %s246 = smul.addr %s245, 8
        %s247 = scalar_lea.vmem [#allocation3], %s246
        %p248 = pneg %p45
        %p249 = pneg %p42
        %p250 = pneg %p66
        %p251 = pneg %p63
        %p252 = pneg %p87
        %p253 = pneg %p84
        %p254 = pneg %p113
        %p255 = pneg %p110
        %s256 = sand.u32 %s100, 1
        %s257 = scalar_lea.sflag [#allocation5], %s256
        %s258 = sand.u32 %s100, 1
        %s259 = smul.addr %s258, 2
        %s260 = scalar_lea.vmem [#allocation8], %s259
        %p261 = pneg %p139
        %p262 = pneg %p136
        %p263 = scmp.lt.s32.totalorder %s24, 1
        %s264 = scalar_select %p263, %s24, 1
        %s265 = smul.addr %s264, 4
        %s266 = scalar_lea.vmem %s4, %s265
        %p267 = pneg %p165
        %p268 = pneg %p162
        %p269 = scmp.lt.s32.totalorder %s24, 1
        %s270 = scalar_select %p269, %s24, 1
        %s271 = smul.addr %s270, 4
        %s272 = scalar_lea.vmem %s5, %s271
        %p273 = scmp.lt.s32.totalorder %s24, 1
        %s274 = scalar_select %p273, %s24, 1
        %s275 = smul.addr %s274, 4
        %s276 = scalar_lea.vmem %s4, %s275
        %p277 = scmp.lt.s32.totalorder %s24, 1
        %s278 = scalar_select %p277, %s24, 1
        %s279 = smul.addr %s278, 4
        %s280 = scalar_lea.vmem %s5, %s279
        %vm282 = vcmask 1044032
        %283 = vst.msk [vmem:[#allocation2] sm:$0xf] %vm282, 0
        %284 = vst.msk [vmem:[#allocation2 + $0x4] sm:$0xf] %vm282, 0
        %285 = vst.msk [vmem:[#allocation2 + $0x8] sm:$0xf] %vm282, 0
        %286 = vst.msk [vmem:[#allocation2 + $0xc] sm:$0xf] %vm282, 0
        %vm287 = vcmask 1041984
        %288 = vst.msk [vmem:[#allocation2 + $0x10] sm:$0x3] %vm287, 0
        %v289 = vld [vmem:[%s232] sm:$0x3]
        %vm290 = vcmask 582656
        %291 = vst.msk [vmem:[#allocation2] sm:$0x3] %vm290, %v289
        %v292 = vld [vmem:[%s232] sm:$0xc]
        %vm293 = vcmask 584706
        %294 = vst.msk [vmem:[#allocation2] sm:$0xc] %vm293, %v292
        %v295 = vld [vmem:[%s232] sm:$0x3]
        %297 = vrot.lane.b32.xlu0 %v295, 127
        %v298 = vpop.permute.xlu0 %297
        %300 = vst.msk [vmem:[#allocation2 + $0x4] sm:$0x3] %vm290, %v298
        %v301 = vld [vmem:[%s232 + $0x4] sm:$0x3]
        %v303 = vrot.slane %v301, 6
        %305 = vst.msk [vmem:[#allocation2 + $0x4] sm:$0xc] %vm293, %v303
        %v306 = vld [vmem:[%s232 + $0x4] sm:$0xc]
        %v308 = vrot.slane %v306, 6
        %v309 = vrot.slane %v308, 4
        %311 = vst.msk [vmem:[#allocation2 + $0x8] sm:$0x3] %vm290, %v309
        %v312 = vld [vmem:[%s232 + $0x4] sm:$0x3]
        %v314 = vrot.slane %v312, 6
        %315 = vrot.lane.b32.xlu0 %v314, 127
        %v316 = vpop.permute.xlu0 %315
        %318 = vst.msk [vmem:[#allocation2 + $0x8] sm:$0xc] %vm293, %v316
        %v319 = vld [vmem:[%s232] sm:$0x3]
        %321 = vrot.lane.b32.xlu0 %v319, 119
        %v322 = vpop.permute.xlu0 %321
        %324 = vst.msk [vmem:[#allocation2 + $0xc] sm:$0x3] %vm290, %v322
        %v325 = vld [vmem:[%s232] sm:$0xc]
        %327 = vrot.lane.b32.xlu0 %v325, 119
        %v328 = vpop.permute.xlu0 %327
        %330 = vst.msk [vmem:[#allocation2 + $0xc] sm:$0xc] %vm293, %v328
        %v331 = vld [vmem:[%s232] sm:$0x3]
        %333 = vrot.lane.b32.xlu0 %v331, 118
        %v334 = vpop.permute.xlu0 %333
        %336 = vst.msk [vmem:[#allocation2 + $0x10] sm:$0x3] %vm290, %v334
        %v337 = vld [vmem:[#allocation6] sm:$0x3]
        %v338 = vld [vmem:[#allocation2] sm:$0xf]
        %v339 = vld [vmem:[#allocation2 + $0x4] sm:$0xf]
        %v340 = vld [vmem:[#allocation2 + $0x8] sm:$0xf]
        %v341 = vld [vmem:[#allocation2 + $0xc] sm:$0xf]
        %v342 = vld [vmem:[#allocation2 + $0x10] sm:$0x3]
        %v348 = vunpack.c.l.b16 %v338
        %v349 = vunpack.c.l.b16 %v339
        %v350 = vunpack.c.l.b16 %v340
        %v351 = vunpack.c.l.b16 %v341
        %v352 = vunpack.c.l.b16 %v342
        %v353 = vpack.c.b16 %v349, %v348
        %v354 = vpack.c.b16 %v351, %v350
        %v355 = vpack.c.b16 %v352, %v352
        %vm358 = vcmask 293888
        %v360 = vsel %vm358, %v337, 0
        %vm362 = vcmask 1041408
        %v364 = vsel %vm362, %v355, 0
        %366 = vmatpush.bf16.msra.mxu0 0
        %367 = vmatpush.bf16.msra.mxu0 0
        %368 = vmatpush.bf16.msra.mxu0 0
        %369 = vmatpush.bf16.msra.mxu0 0
        %370 = vmatpush.bf16.msra.mxu0 0
        %371 = vmatpush.bf16.msra.mxu0 %v364
        %372 = vmatpush.bf16.msra.mxu0 %v354
        %373 = vmatpush.bf16.msra.mxu0 %v353
        %374 = vmatmul.bf16.gmra.mxu0 %v360
        %v375 = vpop.f32.mrf.mxu0
        %v376 = vadd.f32 0.0, %v375
        %v377 = vpop.f32.mrf.mxu0
        %378 = vdwg.mxu0
        %v379 = vpack.c.bf16 %v376, %v376
        %380 = vst [vmem:[%s260] sm:$0x3] %v379
        %v381 = vld [vmem:[%s2] sm:$0x1]
        %v383 = vperm.slane %v381, 0
        %v385 = vmul.f32 %v376, %v383
        %vm386 = vcmask 1043456
        %v387 = vsel %vm386, %v385, 0.0
        %388 = vadd.xlane.f32.xlu0 %v387
        %v389 = vpop.xlane.xlu0 %388
        %v390 = vmul.f32 %v389, 0.015625
        %v391 = vsub.f32 %v376, %v390
        %v392 = vmul.f32 %v391, %v383
        %vm393 = vcmask 3072
        %394 = vst.msk [vmem:[%s276] sm:$0xf] %vm393, %v389
        %v395 = vmul.f32 %v392, %v392
        %v396 = vsel %vm386, %v395, 0.0
        %397 = vadd.xlane.f32.xlu0 %v396
        %v398 = vpop.xlane.xlu0 %397
        %399 = vst.msk [vmem:[%s280] sm:$0xf] %vm393, %v398
        %s400 = sand.u32 %s100, 1
        %s401 = scalar_lea.sflag [#allocation5], %s400
        %s402 = sand.u32 %s100, 1
        %s403 = smul.addr %s402, 2
        %s404 = scalar_lea.vmem [#allocation8], %s403
        %p405 = scmp.lt.s32.totalorder %s24, 1
        %s406 = scalar_select %p405, %s24, 1
        %s407 = smul.addr %s406, 4
        %s408 = scalar_lea.vmem %s4, %s407
        %p409 = scmp.lt.s32.totalorder %s24, 1
        %s410 = scalar_select %p409, %s24, 1
        %s411 = smul.addr %s410, 4
        %s412 = scalar_lea.vmem %s5, %s411
        // Predicated region
        $region41: #{tpu_custom_call.1} parent=31 // pred_check
          %p413 = pneg %p110
        $region42: #{tpu_custom_call.1} parent=31 // pred_check_branch
          %415 = sbr.rel (%p413) target = $region44
        $region43: #{tpu_custom_call.1} parent=31 // pred_region
          %417 = vsyncadd %s401, 0
          %s418 = smul.addr %s24, 2
          %s419 = scalar_lea.hbm %s3, %s418
          %s421 = sshll.u32 %s404, 4
          %s422 = int_to_ptr.vmem [resolvable:$true] %s421
          %s423 = sshll.u32 %s419, 4
          %s424 = int_to_ptr.hbm [resolvable:$true] %s423
          %426 = dma.vmem_to_hbm [thread:$0]  %s422, 32, %s424, %s401
        $region44: #{tpu_custom_call.1} parent=31 // pred_fallthru
          _
        // Predicated region
        $region45: #{tpu_custom_call.1} parent=31 // pred_check
          %p427 = pneg %p136
        $region46: #{tpu_custom_call.1} parent=31 // pred_check_branch
          %429 = sbr.rel (%p427) target = $region48
        $region47: #{tpu_custom_call.1} parent=31 // pred_region
          _
        $region48: #{tpu_custom_call.1} parent=31 // pred_fallthru
          _
        // Predicated region
        $region49: #{tpu_custom_call.1} parent=31 // pred_check
          %p430 = pneg %p162
        $region50: #{tpu_custom_call.1} parent=31 // pred_check_branch
          %432 = sbr.rel (%p430) target = $region52
        $region51: #{tpu_custom_call.1} parent=31 // pred_region
          _
        $region52: #{tpu_custom_call.1} parent=31 // pred_fallthru
          _
      $region32: #{tpu_custom_call.1} parent=5 // pred_fallthru
        _
      %p433 = scmp.le.s32.totalorder 2, %s19
      // Predicated region
      $region53: #{tpu_custom_call.1} parent=5 // pred_check
        %p434 = pneg %p433
      $region54: #{tpu_custom_call.1} parent=5 // pred_check_branch
        %436 = sbr.rel (%p434) target = $region56
      $region55: #{tpu_custom_call.1} parent=5 // pred_region
        %s437 = ssub.s32 %s19, 2
        // Predicated region
        $region57: #{tpu_custom_call.1} parent=55 // pred_check
          %p438 = pneg %p116
        $region58: #{tpu_custom_call.1} parent=55 // pred_check_branch
          %440 = sbr.rel (%p438) target = $region60
        $region59: #{tpu_custom_call.1} parent=55 // pred_region
          %s441 = sand.u32 %s101, 1
          %s442 = scalar_lea.sflag [#allocation5], %s441
          %s443 = sand.u32 %s101, 1
          %s444 = smul.addr %s443, 2
          %s445 = scalar_lea.vmem [#allocation8], %s444
          %447 = dma.done %s442, 32
        $region60: #{tpu_custom_call.1} parent=55 // pred_fallthru
          _
        // Predicated region
        $region61: #{tpu_custom_call.1} parent=55 // pred_check
          %p448 = pneg %p142
        $region62: #{tpu_custom_call.1} parent=55 // pred_check_branch
          %450 = sbr.rel (%p448) target = $region64
        $region63: #{tpu_custom_call.1} parent=55 // pred_region
          %p451 = scmp.lt.s32.totalorder %s25, 1
          %s452 = scalar_select %p451, %s25, 1
          %s453 = smul.addr %s452, 4
          %s454 = scalar_lea.vmem %s4, %s453
        $region64: #{tpu_custom_call.1} parent=55 // pred_fallthru
          _
        // Predicated region
        $region65: #{tpu_custom_call.1} parent=55 // pred_check
          %p455 = pneg %p168
        $region66: #{tpu_custom_call.1} parent=55 // pred_check_branch
          %457 = sbr.rel (%p455) target = $region68
        $region67: #{tpu_custom_call.1} parent=55 // pred_region
          %p458 = scmp.lt.s32.totalorder %s25, 1
          %s459 = scalar_select %p458, %s25, 1
          %s460 = smul.addr %s459, 4
          %s461 = scalar_lea.vmem %s5, %s460
        $region68: #{tpu_custom_call.1} parent=55 // pred_fallthru
          _
      $region56: #{tpu_custom_call.1} parent=5 // pred_fallthru
        _
    $region6: #{tpu_custom_call.1} parent=1 // loop_footer
      %s23 = sadd.s32 1, %s19
    $region7: #{tpu_custom_call.1} parent=1 // loop_footer_branch
      %18 = sbr.rel target = $region3
    $region8: #{tpu_custom_call.1} parent=1 // loop_exit
      _
    %462 = vsyncpa [#allocation4], 1
    %s463 = scalar_lea.sflag [#allocation4], 1
    %464 = vsyncpa %s463, 1
    %465 = vsyncpa [#allocation7], 1
    %466 = vsyncpa [#allocation5], 1
    %s467 = scalar_lea.sflag [#allocation5], 1
    %468 = vsyncpa %s467, 1

</llo_original>
